<compile_context>
chip_gen: v5e
topology: v5e:2x2
jax: 0.10.0
libtpu: 0.0.40
codegen_flags: <defaults>
</compile_context>

<pallas_src>
import jax
import jax.numpy as jnp
import numpy as np
from jax import lax
from jax.experimental import pallas as pl
from jax.experimental.pallas import tpu as pltpu

KH = KW = 3
EPS = 1e-5


def _round_up(x, mult):
    return ((x + mult - 1) // mult) * mult


def encoder_forward(x_nchw, w_hwio, b, gamma, beta):
    """Forward pass matching EncoderModule. Returns NCHW (N, Cout, H//2, W//2).

    `b` (the conv bias) is accepted for interface parity with the PyTorch
    module but is unused: training-mode BatchNorm subtracts the batch mean,
    which cancels any per-channel constant bias exactly.
    """
    del b
    n, cin, h, w = x_nchw.shape
    assert h % 2 == 0 and w % 2 == 0, "MaxPool2d(2,2) path assumes even H, W"
    kh, kw, _, cout = w_hwio.shape
    ho, wo = h // 2, w // 2
    rows = n * ho * wo          # pooled output pixels (= conv pixels per parity)
    m = 4 * rows                # total conv output pixels (4 pool parities)
    kdim = kh * kw * cin

    # ---- glue: NCHW -> NHWC, pad, im2col per pooling parity (bf16, XLA) -----
    x = jnp.transpose(x_nchw, (0, 2, 3, 1)).astype(jnp.bfloat16)
    xp = jnp.pad(x, ((0, 0), (1, 1), (1, 1), (0, 0)))
    pats = []
    for ph in (0, 1):
        for pw in (0, 1):
            taps = []
            for dh in range(kh):
                for dw in range(kw):
                    a0, b0 = ph + dh, pw + dw
                    taps.append(xp[:, a0:a0 + 2 * ho - 1:2,
                                      b0:b0 + 2 * wo - 1:2, :])
            pats.append(jnp.stack(taps, axis=-2).reshape(rows, kdim))
    patches = jnp.concatenate(pats, axis=0)                    # (m, 9*Cin) bf16
    wmat = w_hwio.reshape(kdim, cout).astype(jnp.bfloat16)     # (9*Cin, Cout)
    gb = jnp.stack([gamma.astype(jnp.float32),
                    beta.astype(jnp.float32)], axis=0)         # (2, Cout)

    # ---- tiling: pad M to a tile multiple (no whole-array fallback) ---------
    tm = min(1024, _round_up(m, 16))        # 16-aligned (bf16 sublane packing)
    m_pad = _round_up(m, tm)
    if m_pad != m:
        patches = jnp.pad(patches, ((0, m_pad - m), (0, 0)))   # zero rows
    nt = m_pad // tm

    fused_bytes = (m_pad + rows) * cout * 4                    # y scratch + out
    if fused_bytes > 24 * 1024 * 1024:
        # TODO(synk): add a tiled two-pass (stats pass, then apply pass) variant
        # for activations that do not fit the fused VMEM budget on v7x (64 MiB).
        raise NotImplementedError("activation too large for the fused VMEM path")

    def kernel(p_ref, w_ref, gb_ref, o_ref, y_ref, st_ref):
        i = pl.program_id(0)

        @pl.when(i == 0)
        def _init():
            st_ref[...] = jnp.zeros_like(st_ref)

        # conv tile: one im2col matmul on the MXU, f32 accumulation
        y = jnp.dot(p_ref[...], w_ref[...], preferred_element_type=jnp.float32)
        row0 = pl.multiple_of(i * tm, tm)
        y_ref[pl.ds(row0, tm), :] = y                   # activation stays in VMEM

        # one-pass BN statistics (padded zero rows contribute nothing)
        st_ref[0:1, :] = st_ref[0:1, :] + jnp.sum(y, axis=0, keepdims=True)
        st_ref[1:2, :] = st_ref[1:2, :] + jnp.sum(y * y, axis=0, keepdims=True)

        @pl.when(i == pl.num_programs(0) - 1)
        def _finalize():
            mean = st_ref[0:1, :] * (1.0 / m)
            var = st_ref[1:2, :] * (1.0 / m) - mean * mean    # biased, train mode
            scale = gb_ref[0:1, :] * lax.rsqrt(var + EPS)
            shift = gb_ref[1:2, :] - mean * scale
            # BN affine + ReLU per parity, then the 2x2 max-pool as a parity max
            acc = None
            for p in range(4):
                yp = y_ref[pl.ds(p * rows, rows), :]
                zp = jnp.maximum(yp * scale + shift, 0.0)
                acc = zp if acc is None else jnp.maximum(acc, zp)
            o_ref[...] = acc.astype(o_ref.dtype)

    out_flat = pl.pallas_call(
        kernel,
        grid=(nt,),
        in_specs=[
            pl.BlockSpec((tm, kdim), lambda i: (i, 0)),
            pl.BlockSpec((kdim, cout), lambda i: (0, 0)),
            pl.BlockSpec((2, cout), lambda i: (0, 0)),
        ],
        out_specs=pl.BlockSpec((rows, cout), lambda i: (0, 0)),   # resident output
        out_shape=jax.ShapeDtypeStruct((rows, cout), jnp.float32),
        scratch_shapes=[
            pltpu.VMEM((m_pad, cout), jnp.float32),   # persistent conv activation
            pltpu.VMEM((2, cout), jnp.float32),       # [channel sum; sum of sq.]
        ],
        compiler_params=pltpu.CompilerParams(
            dimension_semantics=("arbitrary",),       # carried stats / output
            vmem_limit_bytes=48 * 1024 * 1024,
        ),
    )(patches, wmat, gb)

    # glue: back to NCHW to match the PyTorch module's output convention
    out_nhwc = out_flat.reshape(n, ho, wo, cout)
    return jnp.transpose(out_nhwc, (0, 3, 1, 2))


if __name__ == "__main__":
    N, Cin, H, W = 2, 4, 16, 16
    Cout = 64

    key = jax.random.PRNGKey(0)
    k1, k2, k3 = jax.random.split(key, 3)
    x = jax.random.normal(k1, (N, Cin, H, W), jnp.float32)
    fan_in = Cin * KH * KW
    w = jax.random.normal(k2, (KH, KW, Cin, Cout), jnp.float32) * np.sqrt(2.0 / fan_in)
    b = jax.random.normal(k3, (Cout,), jnp.float32) * 0.05
    gamma = jnp.ones((Cout,), jnp.float32)   # BatchNorm2d default init
    beta = jnp.zeros((Cout,), jnp.float32)

    out = jax.jit(encoder_forward)(x, w, b, gamma, beta)
    out = jax.block_until_ready(out)
    assert out.shape == (N, Cout, H // 2, W // 2)

    # pure-JAX reference: conv (WITH bias, to show the bias-drop is exact)
    # -> train-mode BN -> ReLU -> 2x2 max-pool
    w_oihw = jnp.transpose(w, (3, 2, 0, 1))
    conv = lax.conv_general_dilated(
        x, w_oihw, (1, 1), ((1, 1), (1, 1)),
        dimension_numbers=("NCHW", "OIHW", "NCHW"),
        precision=lax.Precision.HIGHEST,
    ) + b[None, :, None, None]
    mu = conv.mean(axis=(0, 2, 3), keepdims=True)
    var = ((conv - mu) ** 2).mean(axis=(0, 2, 3), keepdims=True)
    bn = (conv - mu) / jnp.sqrt(var + EPS)
    bn = bn * gamma[None, :, None, None] + beta[None, :, None, None]
    act = jnp.maximum(bn, 0.0)
    ref = lax.reduce_window(act, -jnp.inf, lax.max, (1, 1, 2, 2), (1, 1, 2, 2), "VALID")

    np.testing.assert_allclose(np.asarray(out), np.asarray(ref), atol=3e-2, rtol=3e-2)
    print("KERNEL_OK")
</pallas_src>

<mosaic_0001>
module attributes {stable_mosaic.version = 11 : i64} {
  func.func @kernel(%arg0: i32, %arg1: memref<512x36xbf16, #tpu.memory_space<vmem>>, %arg2: memref<36x64xbf16, #tpu.memory_space<vmem>>, %arg3: memref<2x64xf32, #tpu.memory_space<vmem>>, %arg4: memref<128x64xf32, #tpu.memory_space<vmem>>, %arg5: memref<512x64xf32, #tpu.memory_space<vmem>>, %arg6: memref<2x64xf32, #tpu.memory_space<vmem>>) attributes {dimension_semantics = [#tpu.dimension_semantics<arbitrary>], iteration_bounds = array<i64: 1>, scalar_prefetch = 0 : i64, scratch_operands = 2 : i64, tpu.core_type = #tpu.core_type<tc>, window_params = [{transform_indices = @transform_0, window_bounds = array<i64: 512, 36>}, {pipeline_mode = #tpu.pipeline_mode<synchronous>, transform_indices = @transform_1, window_bounds = array<i64: 36, 64>}, {pipeline_mode = #tpu.pipeline_mode<synchronous>, transform_indices = @transform_2, window_bounds = array<i64: 2, 64>}, {pipeline_mode = #tpu.pipeline_mode<synchronous>, transform_indices = @transform_3, window_bounds = array<i64: 128, 64>}]} {
    %c0_i32 = arith.constant 0 : i32
    %0 = arith.cmpi eq, %arg0, %c0_i32 : i32
    %1 = arith.extui %0 : i1 to i32
    %c0_i32_0 = arith.constant 0 : i32
    %2 = arith.cmpi ne, %1, %c0_i32_0 : i32
    scf.if %2 {
      %cst_16 = arith.constant 0.000000e+00 : f32
      %24 = vector.broadcast %cst_16 : f32 to vector<2x64xf32>
      %c0_17 = arith.constant 0 : index
      %c0_18 = arith.constant 0 : index
      %25 = vector.load %arg6[%c0_17, %c0_18] : memref<2x64xf32, #tpu.memory_space<vmem>>, vector<2x64xf32>
      tpu.vector_store %arg6[%c0_17, %c0_18], %24 {strides = array<i32>} : memref<2x64xf32, #tpu.memory_space<vmem>>, vector<2x64xf32>,
    } else {
    }
    %c0 = arith.constant 0 : index
    %c0_1 = arith.constant 0 : index
    %3 = vector.load %arg1[%c0, %c0_1] : memref<512x36xbf16, #tpu.memory_space<vmem>>, vector<512x36xbf16>
    %c0_2 = arith.constant 0 : index
    %c0_3 = arith.constant 0 : index
    %4 = vector.load %arg2[%c0_2, %c0_3] : memref<36x64xbf16, #tpu.memory_space<vmem>>, vector<36x64xbf16>
    %cst = arith.constant dense<0.000000e+00> : vector<512x64xf32>
    %5 = tpu.matmul %3, %4, %cst {dimension_numbers = #tpu.dot_dimension_numbers<[1], [0], [0], [1], [0, 0, 1, 1], [], []>} : vector<512x36xbf16>, vector<36x64xbf16>, vector<512x64xf32> -> vector<512x64xf32>
    %c512_i32 = arith.constant 512 : i32
    %6 = arith.muli %arg0, %c512_i32 : i32
    %7 = tpu.assume_multiple %6, 512 : i32
    %8 = arith.index_cast %7 : i32 to index
    %c0_4 = arith.constant 0 : index
    %9 = vector.load %arg5[%8, %c0_4] : memref<512x64xf32, #tpu.memory_space<vmem>>, vector<512x64xf32>
    tpu.vector_store %arg5[%8, %c0_4], %5 {strides = array<i32>} : memref<512x64xf32, #tpu.memory_space<vmem>>, vector<512x64xf32>,
    %c0_5 = arith.constant 0 : index
    %c0_6 = arith.constant 0 : index
    %10 = vector.load %arg6[%c0_5, %c0_6] : memref<2x64xf32, #tpu.memory_space<vmem>>, vector<1x64xf32>
    %cst_7 = arith.constant dense<0.000000e+00> : vector<64xf32>
    %11 = vector.multi_reduction <add>, %5, %cst_7 [0] : vector<512x64xf32> to vector<64xf32>
    %12 = vector.shape_cast %11 : vector<64xf32> to vector<1x64xf32>
    %13 = arith.addf %10, %12 : vector<1x64xf32>
    %c0_8 = arith.constant 0 : index
    %c0_9 = arith.constant 0 : index
    %14 = vector.load %arg6[%c0_8, %c0_9] : memref<2x64xf32, #tpu.memory_space<vmem>>, vector<1x64xf32>
    tpu.vector_store %arg6[%c0_8, %c0_9], %13 {strides = array<i32>} : memref<2x64xf32, #tpu.memory_space<vmem>>, vector<1x64xf32>,
    %c1 = arith.constant 1 : index
    %c0_10 = arith.constant 0 : index
    %15 = vector.load %arg6[%c1, %c0_10] : memref<2x64xf32, #tpu.memory_space<vmem>>, vector<1x64xf32>
    %16 = arith.mulf %5, %5 : vector<512x64xf32>
    %cst_11 = arith.constant dense<0.000000e+00> : vector<64xf32>
    %17 = vector.multi_reduction <add>, %16, %cst_11 [0] : vector<512x64xf32> to vector<64xf32>
    %18 = vector.shape_cast %17 : vector<64xf32> to vector<1x64xf32>
    %19 = arith.addf %15, %18 : vector<1x64xf32>
    %c1_12 = arith.constant 1 : index
    %c0_13 = arith.constant 0 : index
    %20 = vector.load %arg6[%c1_12, %c0_13] : memref<2x64xf32, #tpu.memory_space<vmem>>, vector<1x64xf32>
    tpu.vector_store %arg6[%c1_12, %c0_13], %19 {strides = array<i32>} : memref<2x64xf32, #tpu.memory_space<vmem>>, vector<1x64xf32>,
    %c0_i32_14 = arith.constant 0 : i32
    %21 = arith.cmpi eq, %arg0, %c0_i32_14 : i32
    %22 = arith.extui %21 : i1 to i32
    %c0_i32_15 = arith.constant 0 : i32
    %23 = arith.cmpi ne, %22, %c0_i32_15 : i32
    scf.if %23 {
      %c0_16 = arith.constant 0 : index
      %c0_17 = arith.constant 0 : index
      %24 = vector.load %arg6[%c0_16, %c0_17] : memref<2x64xf32, #tpu.memory_space<vmem>>, vector<1x64xf32>
      %cst_18 = arith.constant 0.001953125 : f32
      %25 = vector.broadcast %cst_18 : f32 to vector<1x64xf32>
      %26 = arith.mulf %24, %25 : vector<1x64xf32>
      %c1_19 = arith.constant 1 : index
      %c0_20 = arith.constant 0 : index
      %27 = vector.load %arg6[%c1_19, %c0_20] : memref<2x64xf32, #tpu.memory_space<vmem>>, vector<1x64xf32>
      %cst_21 = arith.constant 0.001953125 : f32
      %28 = vector.broadcast %cst_21 : f32 to vector<1x64xf32>
      %29 = arith.mulf %27, %28 : vector<1x64xf32>
      %30 = arith.mulf %26, %26 : vector<1x64xf32>
      %31 = arith.subf %29, %30 : vector<1x64xf32>
      %c0_22 = arith.constant 0 : index
      %c0_23 = arith.constant 0 : index
      %32 = vector.load %arg3[%c0_22, %c0_23] : memref<2x64xf32, #tpu.memory_space<vmem>>, vector<1x64xf32>
      %cst_24 = arith.constant 9.99999974E-6 : f32
      %33 = vector.broadcast %cst_24 : f32 to vector<1x64xf32>
      %34 = arith.addf %31, %33 : vector<1x64xf32>
      %35 = math.rsqrt %34 : vector<1x64xf32>
      %36 = arith.mulf %32, %35 : vector<1x64xf32>
      %c1_25 = arith.constant 1 : index
      %c0_26 = arith.constant 0 : index
      %37 = vector.load %arg3[%c1_25, %c0_26] : memref<2x64xf32, #tpu.memory_space<vmem>>, vector<1x64xf32>
      %38 = arith.mulf %26, %36 : vector<1x64xf32>
      %39 = arith.subf %37, %38 : vector<1x64xf32>
      %c0_27 = arith.constant 0 : index
      %c0_28 = arith.constant 0 : index
      %40 = vector.load %arg5[%c0_27, %c0_28] : memref<512x64xf32, #tpu.memory_space<vmem>>, vector<128x64xf32>
      %41 = vector.broadcast %36 : vector<1x64xf32> to vector<128x64xf32>
      %42 = arith.mulf %40, %41 : vector<128x64xf32>
      %43 = vector.broadcast %39 : vector<1x64xf32> to vector<128x64xf32>
      %44 = arith.addf %42, %43 : vector<128x64xf32>
      %cst_29 = arith.constant 0.000000e+00 : f32
      %45 = vector.broadcast %cst_29 : f32 to vector<128x64xf32>
      %46 = arith.maximumf %44, %45 : vector<128x64xf32>
      %c128 = arith.constant 128 : index
      %c0_30 = arith.constant 0 : index
      %47 = vector.load %arg5[%c128, %c0_30] : memref<512x64xf32, #tpu.memory_space<vmem>>, vector<128x64xf32>
      %48 = vector.broadcast %36 : vector<1x64xf32> to vector<128x64xf32>
      %49 = arith.mulf %47, %48 : vector<128x64xf32>
      %50 = vector.broadcast %39 : vector<1x64xf32> to vector<128x64xf32>
      %51 = arith.addf %49, %50 : vector<128x64xf32>
      %cst_31 = arith.constant 0.000000e+00 : f32
      %52 = vector.broadcast %cst_31 : f32 to vector<128x64xf32>
      %53 = arith.maximumf %51, %52 : vector<128x64xf32>
      %54 = arith.maximumf %46, %53 : vector<128x64xf32>
      %c256 = arith.constant 256 : index
      %c0_32 = arith.constant 0 : index
      %55 = vector.load %arg5[%c256, %c0_32] : memref<512x64xf32, #tpu.memory_space<vmem>>, vector<128x64xf32>
      %56 = vector.broadcast %36 : vector<1x64xf32> to vector<128x64xf32>
      %57 = arith.mulf %55, %56 : vector<128x64xf32>
      %58 = vector.broadcast %39 : vector<1x64xf32> to vector<128x64xf32>
      %59 = arith.addf %57, %58 : vector<128x64xf32>
      %cst_33 = arith.constant 0.000000e+00 : f32
      %60 = vector.broadcast %cst_33 : f32 to vector<128x64xf32>
      %61 = arith.maximumf %59, %60 : vector<128x64xf32>
      %62 = arith.maximumf %54, %61 : vector<128x64xf32>
      %c384 = arith.constant 384 : index
      %c0_34 = arith.constant 0 : index
      %63 = vector.load %arg5[%c384, %c0_34] : memref<512x64xf32, #tpu.memory_space<vmem>>, vector<128x64xf32>
      %64 = vector.broadcast %36 : vector<1x64xf32> to vector<128x64xf32>
      %65 = arith.mulf %63, %64 : vector<128x64xf32>
      %66 = vector.broadcast %39 : vector<1x64xf32> to vector<128x64xf32>
      %67 = arith.addf %65, %66 : vector<128x64xf32>
      %cst_35 = arith.constant 0.000000e+00 : f32
      %68 = vector.broadcast %cst_35 : f32 to vector<128x64xf32>
      %69 = arith.maximumf %67, %68 : vector<128x64xf32>
      %70 = arith.maximumf %62, %69 : vector<128x64xf32>
      %c0_36 = arith.constant 0 : index
      %c0_37 = arith.constant 0 : index
      %71 = vector.load %arg4[%c0_36, %c0_37] : memref<128x64xf32, #tpu.memory_space<vmem>>, vector<128x64xf32>
      tpu.vector_store %arg4[%c0_36, %c0_37], %70 {strides = array<i32>} : memref<128x64xf32, #tpu.memory_space<vmem>>, vector<128x64xf32>,
    } else {
    }
    return
  }
  func.func @transform_0(%arg0: i32) -> (i32, i32) {
    %c0_i32 = arith.constant 0 : i32
    %c0_i32_0 = arith.constant 0 : i32
    return %arg0, %c0_i32 : i32, i32
  }
  func.func @transform_1(%arg0: i32) -> (i32, i32) {
    %c0_i32 = arith.constant 0 : i32
    %c0_i32_0 = arith.constant 0 : i32
    %c0_i32_1 = arith.constant 0 : i32
    return %c0_i32, %c0_i32_0 : i32, i32
  }
  func.func @transform_2(%arg0: i32) -> (i32, i32) {
    %c0_i32 = arith.constant 0 : i32
    %c0_i32_0 = arith.constant 0 : i32
    %c0_i32_1 = arith.constant 0 : i32
    return %c0_i32, %c0_i32_0 : i32, i32
  }
  func.func @transform_3(%arg0: i32) -> (i32, i32) {
    %c0_i32 = arith.constant 0 : i32
    %c0_i32_0 = arith.constant 0 : i32
    %c0_i32_1 = arith.constant 0 : i32
    return %c0_i32, %c0_i32_0 : i32, i32
  }
}

</mosaic_0001>

<llo_original>
// kernel: encoder_forward.1
$region0: #{encoder_forward.1}
  #allocation0 [shape = 'u32[]', space=smem, size = 0x4, offset = 0x4, fixed_abs, tag = 'smem constant byte address 0x4 - core index']
  #allocation1 [shape = 'u32[72,128]{1,0:T(1,128)}', space=vmem, size = 0x9000, scoped, tag = 'internal scratch']
  #allocation2 [shape = 'f32[512,64]{1,0:T(8,128)}', space=vmem, size = 0x40000, scoped, tag = 'scratch operand']
  #allocation3 [shape = 'f32[2,64]{1,0:T(2,128)}', space=vmem, size = 0x400, scoped, tag = 'scratch operand']
  %s0 = inlined_call_operand.vmem [shape: bf16[512,36], index: 0, kind: input, shape index: {}]
  %s1 = inlined_call_operand.vmem [shape: bf16[36,64], index: 1, kind: input, shape index: {}]
  %s2 = inlined_call_operand.vmem [shape: f32[2,64], index: 2, kind: input, shape index: {}]
  %s3 = inlined_call_operand.hbm [shape: f32[128,64], index: 3, kind: output, shape index: {}]
  %s4 = sld [smem:[#allocation0]]
  $region30: #{encoder_forward.1} parent=0
    _
  %s6 = ssub.s32 1, %s4
  %s7 = scalar_select 0, %s6, %s4
  $region1: #{encoder_forward.1} parent=0
    #allocation4 [shape = 'u8[65536]{0}', space=vmem, size = 0x10000, scoped, tag = 'output window, operand 0, single buffered']
    #allocation5 [shape = 's32[1]{0}', space=sflag, size = 0x4, scoped, tag = 'scoped memory for encoder_forward.1']
    %8 = vsyncpa [#allocation5], 0
    // Predicated region
    $region2: #{encoder_forward.1} parent=1 // pred_check
      _
    $region3: #{encoder_forward.1} parent=1 // pred_check_branch
      %10 = sbr.rel (0) target = $region5
    $region4: #{encoder_forward.1} parent=1 // pred_region
      _
    $region5: #{encoder_forward.1} parent=1 // pred_fallthru
      _
    // Predicated region
    $region6: #{encoder_forward.1} parent=1 // pred_check
      _
    $region7: #{encoder_forward.1} parent=1 // pred_check_branch
      %12 = sbr.rel (0) target = $region9
    $region8: #{encoder_forward.1} parent=1 // pred_region
      _
    $region9: #{encoder_forward.1} parent=1 // pred_fallthru
      _
    // Predicated region
    $region10: #{encoder_forward.1} parent=1 // pred_check
      _
    $region11: #{encoder_forward.1} parent=1 // pred_check_branch
      %14 = sbr.rel (0) target = $region13
    $region12: #{encoder_forward.1} parent=1 // pred_region
      _
    $region13: #{encoder_forward.1} parent=1 // pred_fallthru
      _
    %p16 = scmp.eq.s32.totalorder 0, 0
    // Predicated region
    $region14: #{encoder_forward.1} parent=1 // pred_check
      %p17 = pneg %p16
    $region15: #{encoder_forward.1} parent=1 // pred_check_branch
      %19 = sbr.rel (%p17) target = $region17
    $region16: #{encoder_forward.1} parent=1 // pred_region
      %vm20 = vcmask 517120
      %21 = vst.msk [vmem:[#allocation3] sm:$0x3] %vm20, 0.0
    $region17: #{encoder_forward.1} parent=1 // pred_fallthru
      _
    %v22 = vld [vmem:[%s0] sm:$0xf]
    %v23 = vld [vmem:[%s0 + $0x4] sm:$0xf]
    %v24 = vld [vmem:[%s0 + $0x8] sm:$0xf]
    %v25 = vld [vmem:[%s0 + $0xc] sm:$0xf]
    %v26 = vld [vmem:[%s0 + $0x10] sm:$0xf]
    %v27 = vld [vmem:[%s0 + $0x14] sm:$0xf]
    %v28 = vld [vmem:[%s0 + $0x18] sm:$0xf]
    %v29 = vld [vmem:[%s0 + $0x1c] sm:$0xf]
    %v30 = vld [vmem:[%s0 + $0x20] sm:$0xf]
    %v31 = vld [vmem:[%s0 + $0x24] sm:$0xf]
    %v32 = vld [vmem:[%s0 + $0x28] sm:$0xf]
    %v33 = vld [vmem:[%s0 + $0x2c] sm:$0xf]
    %v34 = vld [vmem:[%s0 + $0x30] sm:$0xf]
    %v35 = vld [vmem:[%s0 + $0x34] sm:$0xf]
    %v36 = vld [vmem:[%s0 + $0x38] sm:$0xf]
    %v37 = vld [vmem:[%s0 + $0x3c] sm:$0xf]
    %v38 = vld [vmem:[%s0 + $0x40] sm:$0xf]
    %v39 = vld [vmem:[%s0 + $0x44] sm:$0xf]
    %v40 = vld [vmem:[%s0 + $0x48] sm:$0xf]
    %v41 = vld [vmem:[%s0 + $0x4c] sm:$0xf]
    %v42 = vld [vmem:[%s0 + $0x50] sm:$0xf]
    %v43 = vld [vmem:[%s0 + $0x54] sm:$0xf]
    %v44 = vld [vmem:[%s0 + $0x58] sm:$0xf]
    %v45 = vld [vmem:[%s0 + $0x5c] sm:$0xf]
    %v46 = vld [vmem:[%s0 + $0x60] sm:$0xf]
    %v47 = vld [vmem:[%s0 + $0x64] sm:$0xf]
    %v48 = vld [vmem:[%s0 + $0x68] sm:$0xf]
    %v49 = vld [vmem:[%s0 + $0x6c] sm:$0xf]
    %v50 = vld [vmem:[%s0 + $0x70] sm:$0xf]
    %v51 = vld [vmem:[%s0 + $0x74] sm:$0xf]
    %v52 = vld [vmem:[%s0 + $0x78] sm:$0xf]
    %v53 = vld [vmem:[%s0 + $0x7c] sm:$0xf]
    %v54 = vld [vmem:[%s0 + $0x80] sm:$0xf]
    %v55 = vld [vmem:[%s0 + $0x84] sm:$0xf]
    %v56 = vld [vmem:[%s0 + $0x88] sm:$0xf]
    %v57 = vld [vmem:[%s0 + $0x8c] sm:$0xf]
    %v58 = vld [vmem:[%s0 + $0x90] sm:$0xf]
    %v59 = vld [vmem:[%s0 + $0x94] sm:$0xf]
    %v60 = vld [vmem:[%s0 + $0x98] sm:$0xf]
    %v61 = vld [vmem:[%s0 + $0x9c] sm:$0xf]
    %v62 = vld [vmem:[%s0 + $0xa0] sm:$0xf]
    %v63 = vld [vmem:[%s0 + $0xa4] sm:$0xf]
    %v64 = vld [vmem:[%s0 + $0xa8] sm:$0xf]
    %v65 = vld [vmem:[%s0 + $0xac] sm:$0xf]
    %v66 = vld [vmem:[%s0 + $0xb0] sm:$0xf]
    %v67 = vld [vmem:[%s0 + $0xb4] sm:$0xf]
    %v68 = vld [vmem:[%s0 + $0xb8] sm:$0xf]
    %v69 = vld [vmem:[%s0 + $0xbc] sm:$0xf]
    %v70 = vld [vmem:[%s0 + $0xc0] sm:$0xf]
    %v71 = vld [vmem:[%s0 + $0xc4] sm:$0xf]
    %v72 = vld [vmem:[%s0 + $0xc8] sm:$0xf]
    %v73 = vld [vmem:[%s0 + $0xcc] sm:$0xf]
    %v74 = vld [vmem:[%s0 + $0xd0] sm:$0xf]
    %v75 = vld [vmem:[%s0 + $0xd4] sm:$0xf]
    %v76 = vld [vmem:[%s0 + $0xd8] sm:$0xf]
    %v77 = vld [vmem:[%s0 + $0xdc] sm:$0xf]
    %v78 = vld [vmem:[%s0 + $0xe0] sm:$0xf]
    %v79 = vld [vmem:[%s0 + $0xe4] sm:$0xf]
    %v80 = vld [vmem:[%s0 + $0xe8] sm:$0xf]
    %v81 = vld [vmem:[%s0 + $0xec] sm:$0xf]
    %v82 = vld [vmem:[%s0 + $0xf0] sm:$0xf]
    %v83 = vld [vmem:[%s0 + $0xf4] sm:$0xf]
    %v84 = vld [vmem:[%s0 + $0xf8] sm:$0xf]
    %v85 = vld [vmem:[%s0 + $0xfc] sm:$0xf]
    %v86 = vld [vmem:[%s1] sm:$0xf]
    %v87 = vld [vmem:[%s1 + $0x4] sm:$0xf]
    %v88 = vld [vmem:[%s1 + $0x8] sm:$0xf]
    %v89 = vld [vmem:[%s1 + $0xc] sm:$0xf]
    %v90 = vld [vmem:[%s1 + $0x10] sm:$0x3]
    %v155 = vunpack.c.l.b16 %v22
    %v156 = vunpack.c.l.b16 %v23
    %v157 = vunpack.c.l.b16 %v24
    %v158 = vunpack.c.l.b16 %v25
    %v159 = vunpack.c.l.b16 %v26
    %v160 = vunpack.c.l.b16 %v27
    %v161 = vunpack.c.l.b16 %v28
    %v162 = vunpack.c.l.b16 %v29
    %v163 = vunpack.c.l.b16 %v30
    %v164 = vunpack.c.l.b16 %v31
    %v165 = vunpack.c.l.b16 %v32
    %v166 = vunpack.c.l.b16 %v33
    %v167 = vunpack.c.l.b16 %v34
    %v168 = vunpack.c.l.b16 %v35
    %v169 = vunpack.c.l.b16 %v36
    %v170 = vunpack.c.l.b16 %v37
    %v171 = vunpack.c.l.b16 %v38
    %v172 = vunpack.c.l.b16 %v39
    %v173 = vunpack.c.l.b16 %v40
    %v174 = vunpack.c.l.b16 %v41
    %v175 = vunpack.c.l.b16 %v42
    %v176 = vunpack.c.l.b16 %v43
    %v177 = vunpack.c.l.b16 %v44
    %v178 = vunpack.c.l.b16 %v45
    %v179 = vunpack.c.l.b16 %v46
    %v180 = vunpack.c.l.b16 %v47
    %v181 = vunpack.c.l.b16 %v48
    %v182 = vunpack.c.l.b16 %v49
    %v183 = vunpack.c.l.b16 %v50
    %v184 = vunpack.c.l.b16 %v51
    %v185 = vunpack.c.l.b16 %v52
    %v186 = vunpack.c.l.b16 %v53
    %v187 = vunpack.c.l.b16 %v54
    %v188 = vunpack.c.l.b16 %v55
    %v189 = vunpack.c.l.b16 %v56
    %v190 = vunpack.c.l.b16 %v57
    %v191 = vunpack.c.l.b16 %v58
    %v192 = vunpack.c.l.b16 %v59
    %v193 = vunpack.c.l.b16 %v60
    %v194 = vunpack.c.l.b16 %v61
    %v195 = vunpack.c.l.b16 %v62
    %v196 = vunpack.c.l.b16 %v63
    %v197 = vunpack.c.l.b16 %v64
    %v198 = vunpack.c.l.b16 %v65
    %v199 = vunpack.c.l.b16 %v66
    %v200 = vunpack.c.l.b16 %v67
    %v201 = vunpack.c.l.b16 %v68
    %v202 = vunpack.c.l.b16 %v69
    %v203 = vunpack.c.l.b16 %v70
    %v204 = vunpack.c.l.b16 %v71
    %v205 = vunpack.c.l.b16 %v72
    %v206 = vunpack.c.l.b16 %v73
    %v207 = vunpack.c.l.b16 %v74
    %v208 = vunpack.c.l.b16 %v75
    %v209 = vunpack.c.l.b16 %v76
    %v210 = vunpack.c.l.b16 %v77
    %v211 = vunpack.c.l.b16 %v78
    %v212 = vunpack.c.l.b16 %v79
    %v213 = vunpack.c.l.b16 %v80
    %v214 = vunpack.c.l.b16 %v81
    %v215 = vunpack.c.l.b16 %v82
    %v216 = vunpack.c.l.b16 %v83
    %v217 = vunpack.c.l.b16 %v84
    %v218 = vunpack.c.l.b16 %v85
    %v219 = vpack.c.b16 %v156, %v155
    %v220 = vpack.c.b16 %v158, %v157
    %v221 = vpack.c.b16 %v160, %v159
    %v222 = vpack.c.b16 %v162, %v161
    %v223 = vpack.c.b16 %v164, %v163
    %v224 = vpack.c.b16 %v166, %v165
    %v225 = vpack.c.b16 %v168, %v167
    %v226 = vpack.c.b16 %v170, %v169
    %v227 = vpack.c.b16 %v172, %v171
    %v228 = vpack.c.b16 %v174, %v173
    %v229 = vpack.c.b16 %v176, %v175
    %v230 = vpack.c.b16 %v178, %v177
    %v231 = vpack.c.b16 %v180, %v179
    %v232 = vpack.c.b16 %v182, %v181
    %v233 = vpack.c.b16 %v184, %v183
    %v234 = vpack.c.b16 %v186, %v185
    %v235 = vpack.c.b16 %v188, %v187
    %v236 = vpack.c.b16 %v190, %v189
    %v237 = vpack.c.b16 %v192, %v191
    %v238 = vpack.c.b16 %v194, %v193
    %v239 = vpack.c.b16 %v196, %v195
    %v240 = vpack.c.b16 %v198, %v197
    %v241 = vpack.c.b16 %v200, %v199
    %v242 = vpack.c.b16 %v202, %v201
    %v243 = vpack.c.b16 %v204, %v203
    %v244 = vpack.c.b16 %v206, %v205
    %v245 = vpack.c.b16 %v208, %v207
    %v246 = vpack.c.b16 %v210, %v209
    %v247 = vpack.c.b16 %v212, %v211
    %v248 = vpack.c.b16 %v214, %v213
    %v249 = vpack.c.b16 %v216, %v215
    %v250 = vpack.c.b16 %v218, %v217
    %v256 = vunpack.c.l.b16 %v86
    %v257 = vunpack.c.l.b16 %v87
    %v258 = vunpack.c.l.b16 %v88
    %v259 = vunpack.c.l.b16 %v89
    %v260 = vunpack.c.l.b16 %v90
    %v261 = vpack.c.b16 %v257, %v256
    %v262 = vpack.c.b16 %v259, %v258
    %v263 = vpack.c.b16 %v260, %v260
    %vm266 = vcmask 293888
    %v268 = vsel %vm266, %v219, 0
    %v271 = vsel %vm266, %v220, 0
    %v274 = vsel %vm266, %v221, 0
    %v277 = vsel %vm266, %v222, 0
    %v280 = vsel %vm266, %v223, 0
    %v283 = vsel %vm266, %v224, 0
    %v286 = vsel %vm266, %v225, 0
    %v289 = vsel %vm266, %v226, 0
    %v292 = vsel %vm266, %v227, 0
    %v295 = vsel %vm266, %v228, 0
    %v298 = vsel %vm266, %v229, 0
    %v301 = vsel %vm266, %v230, 0
    %v304 = vsel %vm266, %v231, 0
    %v307 = vsel %vm266, %v232, 0
    %v310 = vsel %vm266, %v233, 0
    %v313 = vsel %vm266, %v234, 0
    %v316 = vsel %vm266, %v235, 0
    %v319 = vsel %vm266, %v236, 0
    %v322 = vsel %vm266, %v237, 0
    %v325 = vsel %vm266, %v238, 0
    %v328 = vsel %vm266, %v239, 0
    %v331 = vsel %vm266, %v240, 0
    %v334 = vsel %vm266, %v241, 0
    %v337 = vsel %vm266, %v242, 0
    %v340 = vsel %vm266, %v243, 0
    %v343 = vsel %vm266, %v244, 0
    %v346 = vsel %vm266, %v245, 0
    %v349 = vsel %vm266, %v246, 0
    %v352 = vsel %vm266, %v247, 0
    %v355 = vsel %vm266, %v248, 0
    %v358 = vsel %vm266, %v249, 0
    %v361 = vsel %vm266, %v250, 0
    %vm363 = vcmask 1041408
    %v365 = vsel %vm363, %v263, 0
    %367 = vmatpush.bf16.msra.mxu0 0
    %368 = vmatpush.bf16.msra.mxu0 0
    %369 = vmatpush.bf16.msra.mxu0 0
    %370 = vmatpush.bf16.msra.mxu0 0
    %371 = vmatpush.bf16.msra.mxu0 0
    %372 = vmatpush.bf16.msra.mxu0 %v365
    %373 = vmatpush.bf16.msra.mxu0 %v262
    %374 = vmatpush.bf16.msra.mxu0 %v261
    %375 = vmatmul.bf16.gmra.mxu0 %v268
    %v376 = vpop.f32.mrf.mxu0
    %v377 = vadd.f32 0.0, %v376
    %v378 = vpop.f32.mrf.mxu0
    %v379 = vadd.f32 0.0, %v378
    %380 = vmatmul.bf16.gmra.mxu0 %v271
    %v381 = vpop.f32.mrf.mxu0
    %v382 = vadd.f32 0.0, %v381
    %v383 = vpop.f32.mrf.mxu0
    %v384 = vadd.f32 0.0, %v383
    %385 = vmatmul.bf16.gmra.mxu0 %v274
    %v386 = vpop.f32.mrf.mxu0
    %v387 = vadd.f32 0.0, %v386
    %v388 = vpop.f32.mrf.mxu0
    %v389 = vadd.f32 0.0, %v388
    %390 = vmatmul.bf16.gmra.mxu0 %v277
    %v391 = vpop.f32.mrf.mxu0
    %v392 = vadd.f32 0.0, %v391
    %v393 = vpop.f32.mrf.mxu0
    %v394 = vadd.f32 0.0, %v393
    %395 = vmatmul.bf16.gmra.mxu0 %v280
    %v396 = vpop.f32.mrf.mxu0
    %v397 = vadd.f32 0.0, %v396
    %v398 = vpop.f32.mrf.mxu0
    %v399 = vadd.f32 0.0, %v398
    %400 = vmatmul.bf16.gmra.mxu0 %v283
    %v401 = vpop.f32.mrf.mxu0
    %v402 = vadd.f32 0.0, %v401
    %v403 = vpop.f32.mrf.mxu0
    %v404 = vadd.f32 0.0, %v403
    %405 = vmatmul.bf16.gmra.mxu0 %v286
    %v406 = vpop.f32.mrf.mxu0
    %v407 = vadd.f32 0.0, %v406
    %v408 = vpop.f32.mrf.mxu0
    %v409 = vadd.f32 0.0, %v408
    %410 = vmatmul.bf16.gmra.mxu0 %v289
    %v411 = vpop.f32.mrf.mxu0
    %v412 = vadd.f32 0.0, %v411
    %v413 = vpop.f32.mrf.mxu0
    %v414 = vadd.f32 0.0, %v413
    %415 = vmatmul.bf16.gmra.mxu0 %v292
    %v416 = vpop.f32.mrf.mxu0
    %v417 = vadd.f32 0.0, %v416
    %v418 = vpop.f32.mrf.mxu0
    %v419 = vadd.f32 0.0, %v418
    %420 = vmatmul.bf16.gmra.mxu0 %v295
    %v421 = vpop.f32.mrf.mxu0
    %v422 = vadd.f32 0.0, %v421
    %v423 = vpop.f32.mrf.mxu0
    %v424 = vadd.f32 0.0, %v423
    %425 = vmatmul.bf16.gmra.mxu0 %v298
    %v426 = vpop.f32.mrf.mxu0
    %v427 = vadd.f32 0.0, %v426
    %v428 = vpop.f32.mrf.mxu0
    %v429 = vadd.f32 0.0, %v428
    %430 = vmatmul.bf16.gmra.mxu0 %v301
    %v431 = vpop.f32.mrf.mxu0
    %v432 = vadd.f32 0.0, %v431
    %v433 = vpop.f32.mrf.mxu0
    %v434 = vadd.f32 0.0, %v433
    %435 = vmatmul.bf16.gmra.mxu0 %v304
    %v436 = vpop.f32.mrf.mxu0
    %v437 = vadd.f32 0.0, %v436
    %v438 = vpop.f32.mrf.mxu0
    %v439 = vadd.f32 0.0, %v438
    %440 = vmatmul.bf16.gmra.mxu0 %v307
    %v441 = vpop.f32.mrf.mxu0
    %v442 = vadd.f32 0.0, %v441
    %v443 = vpop.f32.mrf.mxu0
    %v444 = vadd.f32 0.0, %v443
    %445 = vmatmul.bf16.gmra.mxu0 %v310
    %v446 = vpop.f32.mrf.mxu0
    %v447 = vadd.f32 0.0, %v446
    %v448 = vpop.f32.mrf.mxu0
    %v449 = vadd.f32 0.0, %v448
    %450 = vmatmul.bf16.gmra.mxu0 %v313
    %v451 = vpop.f32.mrf.mxu0
    %v452 = vadd.f32 0.0, %v451
    %v453 = vpop.f32.mrf.mxu0
    %v454 = vadd.f32 0.0, %v453
    %455 = vmatmul.bf16.gmra.mxu0 %v316
    %v456 = vpop.f32.mrf.mxu0
    %v457 = vadd.f32 0.0, %v456
    %v458 = vpop.f32.mrf.mxu0
    %v459 = vadd.f32 0.0, %v458
    %460 = vmatmul.bf16.gmra.mxu0 %v319
    %v461 = vpop.f32.mrf.mxu0
    %v462 = vadd.f32 0.0, %v461
    %v463 = vpop.f32.mrf.mxu0
    %v464 = vadd.f32 0.0, %v463
    %465 = vmatmul.bf16.gmra.mxu0 %v322
    %v466 = vpop.f32.mrf.mxu0
    %v467 = vadd.f32 0.0, %v466
    %v468 = vpop.f32.mrf.mxu0
    %v469 = vadd.f32 0.0, %v468
    %470 = vmatmul.bf16.gmra.mxu0 %v325
    %v471 = vpop.f32.mrf.mxu0
    %v472 = vadd.f32 0.0, %v471
    %v473 = vpop.f32.mrf.mxu0
    %v474 = vadd.f32 0.0, %v473
    %475 = vmatmul.bf16.gmra.mxu0 %v328
    %v476 = vpop.f32.mrf.mxu0
    %v477 = vadd.f32 0.0, %v476
    %v478 = vpop.f32.mrf.mxu0
    %v479 = vadd.f32 0.0, %v478
    %480 = vmatmul.bf16.gmra.mxu0 %v331
    %v481 = vpop.f32.mrf.mxu0
    %v482 = vadd.f32 0.0, %v481
    %v483 = vpop.f32.mrf.mxu0
    %v484 = vadd.f32 0.0, %v483
    %485 = vmatmul.bf16.gmra.mxu0 %v334
    %v486 = vpop.f32.mrf.mxu0
    %v487 = vadd.f32 0.0, %v486
    %v488 = vpop.f32.mrf.mxu0
    %v489 = vadd.f32 0.0, %v488
    %490 = vmatmul.bf16.gmra.mxu0 %v337
    %v491 = vpop.f32.mrf.mxu0
    %v492 = vadd.f32 0.0, %v491
    %v493 = vpop.f32.mrf.mxu0
    %v494 = vadd.f32 0.0, %v493
    %495 = vmatmul.bf16.gmra.mxu0 %v340
    %v496 = vpop.f32.mrf.mxu0
    %v497 = vadd.f32 0.0, %v496
    %v498 = vpop.f32.mrf.mxu0
    %v499 = vadd.f32 0.0, %v498
    %500 = vmatmul.bf16.gmra.mxu0 %v343
    %v501 = vpop.f32.mrf.mxu0
    %v502 = vadd.f32 0.0, %v501
    %v503 = vpop.f32.mrf.mxu0
    %v504 = vadd.f32 0.0, %v503
    %505 = vmatmul.bf16.gmra.mxu0 %v346
    %v506 = vpop.f32.mrf.mxu0
    %v507 = vadd.f32 0.0, %v506
    %v508 = vpop.f32.mrf.mxu0
    %v509 = vadd.f32 0.0, %v508
    %510 = vmatmul.bf16.gmra.mxu0 %v349
    %v511 = vpop.f32.mrf.mxu0
    %v512 = vadd.f32 0.0, %v511
    %v513 = vpop.f32.mrf.mxu0
    %v514 = vadd.f32 0.0, %v513
    %515 = vmatmul.bf16.gmra.mxu0 %v352
    %v516 = vpop.f32.mrf.mxu0
    %v517 = vadd.f32 0.0, %v516
    %v518 = vpop.f32.mrf.mxu0
    %v519 = vadd.f32 0.0, %v518
    %520 = vmatmul.bf16.gmra.mxu0 %v355
    %v521 = vpop.f32.mrf.mxu0
    %v522 = vadd.f32 0.0, %v521
    %v523 = vpop.f32.mrf.mxu0
    %v524 = vadd.f32 0.0, %v523
    %525 = vmatmul.bf16.gmra.mxu0 %v358
    %v526 = vpop.f32.mrf.mxu0
    %v527 = vadd.f32 0.0, %v526
    %v528 = vpop.f32.mrf.mxu0
    %v529 = vadd.f32 0.0, %v528
    %530 = vmatmul.bf16.gmra.mxu0 %v361
    %v531 = vpop.f32.mrf.mxu0
    %v532 = vadd.f32 0.0, %v531
    %v533 = vpop.f32.mrf.mxu0
    %v534 = vadd.f32 0.0, %v533
    %535 = vdwg.mxu0
    %s536 = smul.u32 0, 512
    %s537 = scalar_lea.vmem [#allocation2], %s536
    %vm538 = vcmask 523264
    %539 = vst.msk [vmem:[%s537] sm:$0xff] %vm538, %v377
    %540 = vst.msk [vmem:[%s537 + $0x8] sm:$0xff] %vm538, %v379
    %541 = vst.msk [vmem:[%s537 + $0x10] sm:$0xff] %vm538, %v382
    %542 = vst.msk [vmem:[%s537 + $0x18] sm:$0xff] %vm538, %v384
    %543 = vst.msk [vmem:[%s537 + $0x20] sm:$0xff] %vm538, %v387
    %544 = vst.msk [vmem:[%s537 + $0x28] sm:$0xff] %vm538, %v389
    %545 = vst.msk [vmem:[%s537 + $0x30] sm:$0xff] %vm538, %v392
    %546 = vst.msk [vmem:[%s537 + $0x38] sm:$0xff] %vm538, %v394
    %547 = vst.msk [vmem:[%s537 + $0x40] sm:$0xff] %vm538, %v397
    %548 = vst.msk [vmem:[%s537 + $0x48] sm:$0xff] %vm538, %v399
    %549 = vst.msk [vmem:[%s537 + $0x50] sm:$0xff] %vm538, %v402
    %550 = vst.msk [vmem:[%s537 + $0x58] sm:$0xff] %vm538, %v404
    %551 = vst.msk [vmem:[%s537 + $0x60] sm:$0xff] %vm538, %v407
    %552 = vst.msk [vmem:[%s537 + $0x68] sm:$0xff] %vm538, %v409
    %553 = vst.msk [vmem:[%s537 + $0x70] sm:$0xff] %vm538, %v412
    %554 = vst.msk [vmem:[%s537 + $0x78] sm:$0xff] %vm538, %v414
    %555 = vst.msk [vmem:[%s537 + $0x80] sm:$0xff] %vm538, %v417
    %556 = vst.msk [vmem:[%s537 + $0x88] sm:$0xff] %vm538, %v419
    %557 = vst.msk [vmem:[%s537 + $0x90] sm:$0xff] %vm538, %v422
    %558 = vst.msk [vmem:[%s537 + $0x98] sm:$0xff] %vm538, %v424
    %559 = vst.msk [vmem:[%s537 + $0xa0] sm:$0xff] %vm538, %v427
    %560 = vst.msk [vmem:[%s537 + $0xa8] sm:$0xff] %vm538, %v429
    %561 = vst.msk [vmem:[%s537 + $0xb0] sm:$0xff] %vm538, %v432
    %562 = vst.msk [vmem:[%s537 + $0xb8] sm:$0xff] %vm538, %v434
    %563 = vst.msk [vmem:[%s537 + $0xc0] sm:$0xff] %vm538, %v437
    %564 = vst.msk [vmem:[%s537 + $0xc8] sm:$0xff] %vm538, %v439
    %565 = vst.msk [vmem:[%s537 + $0xd0] sm:$0xff] %vm538, %v442
    %566 = vst.msk [vmem:[%s537 + $0xd8] sm:$0xff] %vm538, %v444
    %567 = vst.msk [vmem:[%s537 + $0xe0] sm:$0xff] %vm538, %v447
    %568 = vst.msk [vmem:[%s537 + $0xe8] sm:$0xff] %vm538, %v449
    %569 = vst.msk [vmem:[%s537 + $0xf0] sm:$0xff] %vm538, %v452
    %570 = vst.msk [vmem:[%s537 + $0xf8] sm:$0xff] %vm538, %v454
    %571 = vst.msk [vmem:[%s537 + $0x100] sm:$0xff] %vm538, %v457
    %572 = vst.msk [vmem:[%s537 + $0x108] sm:$0xff] %vm538, %v459
    %573 = vst.msk [vmem:[%s537 + $0x110] sm:$0xff] %vm538, %v462
    %574 = vst.msk [vmem:[%s537 + $0x118] sm:$0xff] %vm538, %v464
    %575 = vst.msk [vmem:[%s537 + $0x120] sm:$0xff] %vm538, %v467
    %576 = vst.msk [vmem:[%s537 + $0x128] sm:$0xff] %vm538, %v469
    %577 = vst.msk [vmem:[%s537 + $0x130] sm:$0xff] %vm538, %v472
    %578 = vst.msk [vmem:[%s537 + $0x138] sm:$0xff] %vm538, %v474
    %579 = vst.msk [vmem:[%s537 + $0x140] sm:$0xff] %vm538, %v477
    %580 = vst.msk [vmem:[%s537 + $0x148] sm:$0xff] %vm538, %v479
    %581 = vst.msk [vmem:[%s537 + $0x150] sm:$0xff] %vm538, %v482
    %582 = vst.msk [vmem:[%s537 + $0x158] sm:$0xff] %vm538, %v484
    %583 = vst.msk [vmem:[%s537 + $0x160] sm:$0xff] %vm538, %v487
    %584 = vst.msk [vmem:[%s537 + $0x168] sm:$0xff] %vm538, %v489
    %585 = vst.msk [vmem:[%s537 + $0x170] sm:$0xff] %vm538, %v492
    %586 = vst.msk [vmem:[%s537 + $0x178] sm:$0xff] %vm538, %v494
    %587 = vst.msk [vmem:[%s537 + $0x180] sm:$0xff] %vm538, %v497
    %588 = vst.msk [vmem:[%s537 + $0x188] sm:$0xff] %vm538, %v499
    %589 = vst.msk [vmem:[%s537 + $0x190] sm:$0xff] %vm538, %v502
    %590 = vst.msk [vmem:[%s537 + $0x198] sm:$0xff] %vm538, %v504
    %591 = vst.msk [vmem:[%s537 + $0x1a0] sm:$0xff] %vm538, %v507
    %592 = vst.msk [vmem:[%s537 + $0x1a8] sm:$0xff] %vm538, %v509
    %593 = vst.msk [vmem:[%s537 + $0x1b0] sm:$0xff] %vm538, %v512
    %594 = vst.msk [vmem:[%s537 + $0x1b8] sm:$0xff] %vm538, %v514
    %595 = vst.msk [vmem:[%s537 + $0x1c0] sm:$0xff] %vm538, %v517
    %596 = vst.msk [vmem:[%s537 + $0x1c8] sm:$0xff] %vm538, %v519
    %597 = vst.msk [vmem:[%s537 + $0x1d0] sm:$0xff] %vm538, %v522
    %598 = vst.msk [vmem:[%s537 + $0x1d8] sm:$0xff] %vm538, %v524
    %599 = vst.msk [vmem:[%s537 + $0x1e0] sm:$0xff] %vm538, %v527
    %600 = vst.msk [vmem:[%s537 + $0x1e8] sm:$0xff] %vm538, %v529
    %601 = vst.msk [vmem:[%s537 + $0x1f0] sm:$0xff] %vm538, %v532
    %602 = vst.msk [vmem:[%s537 + $0x1f8] sm:$0xff] %vm538, %v534
    %v603 = vld [vmem:[#allocation3] sm:$0x1]
    %v604 = vsel %vm538, %v377, 0.0
    %v605 = vsel %vm538, %v379, 0.0
    %v606 = vadd.f32 %v604, %v605
    %v607 = vsel %vm538, %v382, 0.0
    %v608 = vadd.f32 %v606, %v607
    %v609 = vsel %vm538, %v384, 0.0
    %v610 = vadd.f32 %v608, %v609
    %v611 = vsel %vm538, %v387, 0.0
    %v612 = vadd.f32 %v610, %v611
    %v613 = vsel %vm538, %v389, 0.0
    %v614 = vadd.f32 %v612, %v613
    %v615 = vsel %vm538, %v392, 0.0
    %v616 = vadd.f32 %v614, %v615
    %v617 = vsel %vm538, %v394, 0.0
    %v618 = vadd.f32 %v616, %v617
    %v619 = vsel %vm538, %v397, 0.0
    %v620 = vadd.f32 %v618, %v619
    %v621 = vsel %vm538, %v399, 0.0
    %v622 = vadd.f32 %v620, %v621
    %v623 = vsel %vm538, %v402, 0.0
    %v624 = vadd.f32 %v622, %v623
    %v625 = vsel %vm538, %v404, 0.0
    %v626 = vadd.f32 %v624, %v625
    %v627 = vsel %vm538, %v407, 0.0
    %v628 = vadd.f32 %v626, %v627
    %v629 = vsel %vm538, %v409, 0.0
    %v630 = vadd.f32 %v628, %v629
    %v631 = vsel %vm538, %v412, 0.0
    %v632 = vadd.f32 %v630, %v631
    %v633 = vsel %vm538, %v414, 0.0
    %v634 = vadd.f32 %v632, %v633
    %v635 = vsel %vm538, %v417, 0.0
    %v636 = vadd.f32 %v634, %v635
    %v637 = vsel %vm538, %v419, 0.0
    %v638 = vadd.f32 %v636, %v637
    %v639 = vsel %vm538, %v422, 0.0
    %v640 = vadd.f32 %v638, %v639
    %v641 = vsel %vm538, %v424, 0.0
    %v642 = vadd.f32 %v640, %v641
    %v643 = vsel %vm538, %v427, 0.0
    %v644 = vadd.f32 %v642, %v643
    %v645 = vsel %vm538, %v429, 0.0
    %v646 = vadd.f32 %v644, %v645
    %v647 = vsel %vm538, %v432, 0.0
    %v648 = vadd.f32 %v646, %v647
    %v649 = vsel %vm538, %v434, 0.0
    %v650 = vadd.f32 %v648, %v649
    %v651 = vsel %vm538, %v437, 0.0
    %v652 = vadd.f32 %v650, %v651
    %v653 = vsel %vm538, %v439, 0.0
    %v654 = vadd.f32 %v652, %v653
    %v655 = vsel %vm538, %v442, 0.0
    %v656 = vadd.f32 %v654, %v655
    %v657 = vsel %vm538, %v444, 0.0
    %v658 = vadd.f32 %v656, %v657
    %v659 = vsel %vm538, %v447, 0.0
    %v660 = vadd.f32 %v658, %v659
    %v661 = vsel %vm538, %v449, 0.0
    %v662 = vadd.f32 %v660, %v661
    %v663 = vsel %vm538, %v452, 0.0
    %v664 = vadd.f32 %v662, %v663
    %v665 = vsel %vm538, %v454, 0.0
    %v666 = vadd.f32 %v664, %v665
    %v667 = vsel %vm538, %v457, 0.0
    %v668 = vadd.f32 %v666, %v667
    %v669 = vsel %vm538, %v459, 0.0
    %v670 = vadd.f32 %v668, %v669
    %v671 = vsel %vm538, %v462, 0.0
    %v672 = vadd.f32 %v670, %v671
    %v673 = vsel %vm538, %v464, 0.0
    %v674 = vadd.f32 %v672, %v673
    %v675 = vsel %vm538, %v467, 0.0
    %v676 = vadd.f32 %v674, %v675
    %v677 = vsel %vm538, %v469, 0.0
    %v678 = vadd.f32 %v676, %v677
    %v679 = vsel %vm538, %v472, 0.0
    %v680 = vadd.f32 %v678, %v679
    %v681 = vsel %vm538, %v474, 0.0
    %v682 = vadd.f32 %v680, %v681
    %v683 = vsel %vm538, %v477, 0.0
    %v684 = vadd.f32 %v682, %v683
    %v685 = vsel %vm538, %v479, 0.0
    %v686 = vadd.f32 %v684, %v685
    %v687 = vsel %vm538, %v482, 0.0
    %v688 = vadd.f32 %v686, %v687
    %v689 = vsel %vm538, %v484, 0.0
    %v690 = vadd.f32 %v688, %v689
    %v691 = vsel %vm538, %v487, 0.0
    %v692 = vadd.f32 %v690, %v691
    %v693 = vsel %vm538, %v489, 0.0
    %v694 = vadd.f32 %v692, %v693
    %v695 = vsel %vm538, %v492, 0.0
    %v696 = vadd.f32 %v694, %v695
    %v697 = vsel %vm538, %v494, 0.0
    %v698 = vadd.f32 %v696, %v697
    %v699 = vsel %vm538, %v497, 0.0
    %v700 = vadd.f32 %v698, %v699
    %v701 = vsel %vm538, %v499, 0.0
    %v702 = vadd.f32 %v700, %v701
    %v703 = vsel %vm538, %v502, 0.0
    %v704 = vadd.f32 %v702, %v703
    %v705 = vsel %vm538, %v504, 0.0
    %v706 = vadd.f32 %v704, %v705
    %v707 = vsel %vm538, %v507, 0.0
    %v708 = vadd.f32 %v706, %v707
    %v709 = vsel %vm538, %v509, 0.0
    %v710 = vadd.f32 %v708, %v709
    %v711 = vsel %vm538, %v512, 0.0
    %v712 = vadd.f32 %v710, %v711
    %v713 = vsel %vm538, %v514, 0.0
    %v714 = vadd.f32 %v712, %v713
    %v715 = vsel %vm538, %v517, 0.0
    %v716 = vadd.f32 %v714, %v715
    %v717 = vsel %vm538, %v519, 0.0
    %v718 = vadd.f32 %v716, %v717
    %v719 = vsel %vm538, %v522, 0.0
    %v720 = vadd.f32 %v718, %v719
    %v721 = vsel %vm538, %v524, 0.0
    %v722 = vadd.f32 %v720, %v721
    %v723 = vsel %vm538, %v527, 0.0
    %v724 = vadd.f32 %v722, %v723
    %v725 = vsel %vm538, %v529, 0.0
    %v726 = vadd.f32 %v724, %v725
    %v727 = vsel %vm538, %v532, 0.0
    %v728 = vadd.f32 %v726, %v727
    %v729 = vsel %vm538, %v534, 0.0
    %v730 = vadd.f32 %v728, %v729
    %v731 = vrot.slane %v730, 4
    %v732 = vadd.f32 %v730, %v731
    %v733 = vrot.slane %v732, 2
    %v734 = vadd.f32 %v732, %v733
    %v735 = vrot.slane %v734, 1
    %v736 = vadd.f32 %v734, %v735
    %v737 = vadd.f32 %v603, %v736
    %vm738 = vcmask 516096
    %739 = vst.msk [vmem:[#allocation3] sm:$0x1] %vm738, %v737
    %v740 = vld [vmem:[#allocation3 + $0x1] sm:$0x1]
    %v741 = vmul.f32 %v377, %v377
    %v742 = vmul.f32 %v379, %v379
    %v743 = vmul.f32 %v382, %v382
    %v744 = vmul.f32 %v384, %v384
    %v745 = vmul.f32 %v387, %v387
    %v746 = vmul.f32 %v389, %v389
    %v747 = vmul.f32 %v392, %v392
    %v748 = vmul.f32 %v394, %v394
    %v749 = vmul.f32 %v397, %v397
    %v750 = vmul.f32 %v399, %v399
    %v751 = vmul.f32 %v402, %v402
    %v752 = vmul.f32 %v404, %v404
    %v753 = vmul.f32 %v407, %v407
    %v754 = vmul.f32 %v409, %v409
    %v755 = vmul.f32 %v412, %v412
    %v756 = vmul.f32 %v414, %v414
    %v757 = vmul.f32 %v417, %v417
    %v758 = vmul.f32 %v419, %v419
    %v759 = vmul.f32 %v422, %v422
    %v760 = vmul.f32 %v424, %v424
    %v761 = vmul.f32 %v427, %v427
    %v762 = vmul.f32 %v429, %v429
    %v763 = vmul.f32 %v432, %v432
    %v764 = vmul.f32 %v434, %v434
    %v765 = vmul.f32 %v437, %v437
    %v766 = vmul.f32 %v439, %v439
    %v767 = vmul.f32 %v442, %v442
    %v768 = vmul.f32 %v444, %v444
    %v769 = vmul.f32 %v447, %v447
    %v770 = vmul.f32 %v449, %v449
    %v771 = vmul.f32 %v452, %v452
    %v772 = vmul.f32 %v454, %v454
    %v773 = vmul.f32 %v457, %v457
    %v774 = vmul.f32 %v459, %v459
    %v775 = vmul.f32 %v462, %v462
    %v776 = vmul.f32 %v464, %v464
    %v777 = vmul.f32 %v467, %v467
    %v778 = vmul.f32 %v469, %v469
    %v779 = vmul.f32 %v472, %v472
    %v780 = vmul.f32 %v474, %v474
    %v781 = vmul.f32 %v477, %v477
    %v782 = vmul.f32 %v479, %v479
    %v783 = vmul.f32 %v482, %v482
    %v784 = vmul.f32 %v484, %v484
    %v785 = vmul.f32 %v487, %v487
    %v786 = vmul.f32 %v489, %v489
    %v787 = vmul.f32 %v492, %v492
    %v788 = vmul.f32 %v494, %v494
    %v789 = vmul.f32 %v497, %v497
    %v790 = vmul.f32 %v499, %v499
    %v791 = vmul.f32 %v502, %v502
    %v792 = vmul.f32 %v504, %v504
    %v793 = vmul.f32 %v507, %v507
    %v794 = vmul.f32 %v509, %v509
    %v795 = vmul.f32 %v512, %v512
    %v796 = vmul.f32 %v514, %v514
    %v797 = vmul.f32 %v517, %v517
    %v798 = vmul.f32 %v519, %v519
    %v799 = vmul.f32 %v522, %v522
    %v800 = vmul.f32 %v524, %v524
    %v801 = vmul.f32 %v527, %v527
    %v802 = vmul.f32 %v529, %v529
    %v803 = vmul.f32 %v532, %v532
    %v804 = vmul.f32 %v534, %v534
    %v805 = vsel %vm538, %v741, 0.0
    %v806 = vsel %vm538, %v742, 0.0
    %v807 = vadd.f32 %v805, %v806
    %v808 = vsel %vm538, %v743, 0.0
    %v809 = vadd.f32 %v807, %v808
    %v810 = vsel %vm538, %v744, 0.0
    %v811 = vadd.f32 %v809, %v810
    %v812 = vsel %vm538, %v745, 0.0
    %v813 = vadd.f32 %v811, %v812
    %v814 = vsel %vm538, %v746, 0.0
    %v815 = vadd.f32 %v813, %v814
    %v816 = vsel %vm538, %v747, 0.0
    %v817 = vadd.f32 %v815, %v816
    %v818 = vsel %vm538, %v748, 0.0
    %v819 = vadd.f32 %v817, %v818
    %v820 = vsel %vm538, %v749, 0.0
    %v821 = vadd.f32 %v819, %v820
    %v822 = vsel %vm538, %v750, 0.0
    %v823 = vadd.f32 %v821, %v822
    %v824 = vsel %vm538, %v751, 0.0
    %v825 = vadd.f32 %v823, %v824
    %v826 = vsel %vm538, %v752, 0.0
    %v827 = vadd.f32 %v825, %v826
    %v828 = vsel %vm538, %v753, 0.0
    %v829 = vadd.f32 %v827, %v828
    %v830 = vsel %vm538, %v754, 0.0
    %v831 = vadd.f32 %v829, %v830
    %v832 = vsel %vm538, %v755, 0.0
    %v833 = vadd.f32 %v831, %v832
    %v834 = vsel %vm538, %v756, 0.0
    %v835 = vadd.f32 %v833, %v834
    %v836 = vsel %vm538, %v757, 0.0
    %v837 = vadd.f32 %v835, %v836
    %v838 = vsel %vm538, %v758, 0.0
    %v839 = vadd.f32 %v837, %v838
    %v840 = vsel %vm538, %v759, 0.0
    %v841 = vadd.f32 %v839, %v840
    %v842 = vsel %vm538, %v760, 0.0
    %v843 = vadd.f32 %v841, %v842
    %v844 = vsel %vm538, %v761, 0.0
    %v845 = vadd.f32 %v843, %v844
    %v846 = vsel %vm538, %v762, 0.0
    %v847 = vadd.f32 %v845, %v846
    %v848 = vsel %vm538, %v763, 0.0
    %v849 = vadd.f32 %v847, %v848
    %v850 = vsel %vm538, %v764, 0.0
    %v851 = vadd.f32 %v849, %v850
    %v852 = vsel %vm538, %v765, 0.0
    %v853 = vadd.f32 %v851, %v852
    %v854 = vsel %vm538, %v766, 0.0
    %v855 = vadd.f32 %v853, %v854
    %v856 = vsel %vm538, %v767, 0.0
    %v857 = vadd.f32 %v855, %v856
    %v858 = vsel %vm538, %v768, 0.0
    %v859 = vadd.f32 %v857, %v858
    %v860 = vsel %vm538, %v769, 0.0
    %v861 = vadd.f32 %v859, %v860
    %v862 = vsel %vm538, %v770, 0.0
    %v863 = vadd.f32 %v861, %v862
    %v864 = vsel %vm538, %v771, 0.0
    %v865 = vadd.f32 %v863, %v864
    %v866 = vsel %vm538, %v772, 0.0
    %v867 = vadd.f32 %v865, %v866
    %v868 = vsel %vm538, %v773, 0.0
    %v869 = vadd.f32 %v867, %v868
    %v870 = vsel %vm538, %v774, 0.0
    %v871 = vadd.f32 %v869, %v870
    %v872 = vsel %vm538, %v775, 0.0
    %v873 = vadd.f32 %v871, %v872
    %v874 = vsel %vm538, %v776, 0.0
    %v875 = vadd.f32 %v873, %v874
    %v876 = vsel %vm538, %v777, 0.0
    %v877 = vadd.f32 %v875, %v876
    %v878 = vsel %vm538, %v778, 0.0
    %v879 = vadd.f32 %v877, %v878
    %v880 = vsel %vm538, %v779, 0.0
    %v881 = vadd.f32 %v879, %v880
    %v882 = vsel %vm538, %v780, 0.0
    %v883 = vadd.f32 %v881, %v882
    %v884 = vsel %vm538, %v781, 0.0
    %v885 = vadd.f32 %v883, %v884
    %v886 = vsel %vm538, %v782, 0.0
    %v887 = vadd.f32 %v885, %v886
    %v888 = vsel %vm538, %v783, 0.0
    %v889 = vadd.f32 %v887, %v888
    %v890 = vsel %vm538, %v784, 0.0
    %v891 = vadd.f32 %v889, %v890
    %v892 = vsel %vm538, %v785, 0.0
    %v893 = vadd.f32 %v891, %v892
    %v894 = vsel %vm538, %v786, 0.0
    %v895 = vadd.f32 %v893, %v894
    %v896 = vsel %vm538, %v787, 0.0
    %v897 = vadd.f32 %v895, %v896
    %v898 = vsel %vm538, %v788, 0.0
    %v899 = vadd.f32 %v897, %v898
    %v900 = vsel %vm538, %v789, 0.0
    %v901 = vadd.f32 %v899, %v900
    %v902 = vsel %vm538, %v790, 0.0
    %v903 = vadd.f32 %v901, %v902
    %v904 = vsel %vm538, %v791, 0.0
    %v905 = vadd.f32 %v903, %v904
    %v906 = vsel %vm538, %v792, 0.0
    %v907 = vadd.f32 %v905, %v906
    %v908 = vsel %vm538, %v793, 0.0
    %v909 = vadd.f32 %v907, %v908
    %v910 = vsel %vm538, %v794, 0.0
    %v911 = vadd.f32 %v909, %v910
    %v912 = vsel %vm538, %v795, 0.0
    %v913 = vadd.f32 %v911, %v912
    %v914 = vsel %vm538, %v796, 0.0
    %v915 = vadd.f32 %v913, %v914
    %v916 = vsel %vm538, %v797, 0.0
    %v917 = vadd.f32 %v915, %v916
    %v918 = vsel %vm538, %v798, 0.0
    %v919 = vadd.f32 %v917, %v918
    %v920 = vsel %vm538, %v799, 0.0
    %v921 = vadd.f32 %v919, %v920
    %v922 = vsel %vm538, %v800, 0.0
    %v923 = vadd.f32 %v921, %v922
    %v924 = vsel %vm538, %v801, 0.0
    %v925 = vadd.f32 %v923, %v924
    %v926 = vsel %vm538, %v802, 0.0
    %v927 = vadd.f32 %v925, %v926
    %v928 = vsel %vm538, %v803, 0.0
    %v929 = vadd.f32 %v927, %v928
    %v930 = vsel %vm538, %v804, 0.0
    %v931 = vadd.f32 %v929, %v930
    %v932 = vrot.slane %v931, 4
    %v933 = vadd.f32 %v931, %v932
    %v934 = vrot.slane %v933, 2
    %v935 = vadd.f32 %v933, %v934
    %v936 = vrot.slane %v935, 1
    %v937 = vadd.f32 %v935, %v936
    %v938 = vadd.f32 %v740, %v937
    %939 = vst.msk [vmem:[#allocation3 + $0x1] sm:$0x1] %vm738, %v938
    // Predicated region
    $region18: #{encoder_forward.1} parent=1 // pred_check
      %p940 = pneg %p16
    $region19: #{encoder_forward.1} parent=1 // pred_check_branch
      %942 = sbr.rel (%p940) target = $region21
    $region20: #{encoder_forward.1} parent=1 // pred_region
      %v943 = vld [vmem:[#allocation3] sm:$0x1]
      %v944 = vmul.f32 %v943, 0.001953125
      %v945 = vld [vmem:[#allocation3 + $0x1] sm:$0x1]
      %v946 = vmul.f32 %v945, 0.001953125
      %v947 = vmul.f32 %v944, %v944
      %v948 = vsub.f32 %v946, %v947
      %v949 = vld [vmem:[%s2] sm:$0x1]
      %v950 = vadd.f32 %v948, 1e-05
      %v951 = vrsqrt.pop %v950
      %v952 = vmul.f32 %v951, %v950
      %v953 = vmul.f32 %v952, %v951
      %v954 = vmul.f32 0.5, %v953
      %v955 = vsub.f32 1.5, %v954
      %v956 = vmul.f32 %v951, %v955
      %vm957 = vweird.f32 %v950
      %vm958 = vweird.f32 %v951
      %vm959 = vmor %vm957, %vm958
      %v960 = vsel %vm959, %v951, %v956
      %v961 = vmul.f32 %v949, %v960
      %v962 = vld [vmem:[%s2 + $0x1] sm:$0x1]
      %v963 = vmul.f32 %v944, %v961
      %v964 = vsub.f32 %v962, %v963
      %v965 = vld [vmem:[#allocation2] sm:$0xff]
      %v966 = vld [vmem:[#allocation2 + $0x8] sm:$0xff]
      %v967 = vld [vmem:[#allocation2 + $0x10] sm:$0xff]
      %v968 = vld [vmem:[#allocation2 + $0x18] sm:$0xff]
      %v969 = vld [vmem:[#allocation2 + $0x20] sm:$0xff]
      %v970 = vld [vmem:[#allocation2 + $0x28] sm:$0xff]
      %v971 = vld [vmem:[#allocation2 + $0x30] sm:$0xff]
      %v972 = vld [vmem:[#allocation2 + $0x38] sm:$0xff]
      %v973 = vld [vmem:[#allocation2 + $0x40] sm:$0xff]
      %v974 = vld [vmem:[#allocation2 + $0x48] sm:$0xff]
      %v975 = vld [vmem:[#allocation2 + $0x50] sm:$0xff]
      %v976 = vld [vmem:[#allocation2 + $0x58] sm:$0xff]
      %v977 = vld [vmem:[#allocation2 + $0x60] sm:$0xff]
      %v978 = vld [vmem:[#allocation2 + $0x68] sm:$0xff]
      %v979 = vld [vmem:[#allocation2 + $0x70] sm:$0xff]
      %v980 = vld [vmem:[#allocation2 + $0x78] sm:$0xff]
      %v981 = vperm.slane %v961, 0
      %v982 = vmul.f32 %v965, %v981
      %v983 = vmul.f32 %v966, %v981
      %v984 = vmul.f32 %v967, %v981
      %v985 = vmul.f32 %v968, %v981
      %v986 = vmul.f32 %v969, %v981
      %v987 = vmul.f32 %v970, %v981
      %v988 = vmul.f32 %v971, %v981
      %v989 = vmul.f32 %v972, %v981
      %v990 = vmul.f32 %v973, %v981
      %v991 = vmul.f32 %v974, %v981
      %v992 = vmul.f32 %v975, %v981
      %v993 = vmul.f32 %v976, %v981
      %v994 = vmul.f32 %v977, %v981
      %v995 = vmul.f32 %v978, %v981
      %v996 = vmul.f32 %v979, %v981
      %v997 = vmul.f32 %v980, %v981
      %v998 = vperm.slane %v964, 0
      %v999 = vadd.f32 %v982, %v998
      %v1000 = vadd.f32 %v983, %v998
      %v1001 = vadd.f32 %v984, %v998
      %v1002 = vadd.f32 %v985, %v998
      %v1003 = vadd.f32 %v986, %v998
      %v1004 = vadd.f32 %v987, %v998
      %v1005 = vadd.f32 %v988, %v998
      %v1006 = vadd.f32 %v989, %v998
      %v1007 = vadd.f32 %v990, %v998
      %v1008 = vadd.f32 %v991, %v998
      %v1009 = vadd.f32 %v992, %v998
      %v1010 = vadd.f32 %v993, %v998
      %v1011 = vadd.f32 %v994, %v998
      %v1012 = vadd.f32 %v995, %v998
      %v1013 = vadd.f32 %v996, %v998
      %v1014 = vadd.f32 %v997, %v998
      %v1015 = vmax.f32 %v999, 0.0
      %v1016 = vmax.f32 %v1000, 0.0
      %v1017 = vmax.f32 %v1001, 0.0
      %v1018 = vmax.f32 %v1002, 0.0
      %v1019 = vmax.f32 %v1003, 0.0
      %v1020 = vmax.f32 %v1004, 0.0
      %v1021 = vmax.f32 %v1005, 0.0
      %v1022 = vmax.f32 %v1006, 0.0
      %v1023 = vmax.f32 %v1007, 0.0
      %v1024 = vmax.f32 %v1008, 0.0
      %v1025 = vmax.f32 %v1009, 0.0
      %v1026 = vmax.f32 %v1010, 0.0
      %v1027 = vmax.f32 %v1011, 0.0
      %v1028 = vmax.f32 %v1012, 0.0
      %v1029 = vmax.f32 %v1013, 0.0
      %v1030 = vmax.f32 %v1014, 0.0
      %v1031 = vld [vmem:[#allocation2 + $0x80] sm:$0xff]
      %v1032 = vld [vmem:[#allocation2 + $0x88] sm:$0xff]
      %v1033 = vld [vmem:[#allocation2 + $0x90] sm:$0xff]
      %v1034 = vld [vmem:[#allocation2 + $0x98] sm:$0xff]
      %v1035 = vld [vmem:[#allocation2 + $0xa0] sm:$0xff]
      %v1036 = vld [vmem:[#allocation2 + $0xa8] sm:$0xff]
      %v1037 = vld [vmem:[#allocation2 + $0xb0] sm:$0xff]
      %v1038 = vld [vmem:[#allocation2 + $0xb8] sm:$0xff]
      %v1039 = vld [vmem:[#allocation2 + $0xc0] sm:$0xff]
      %v1040 = vld [vmem:[#allocation2 + $0xc8] sm:$0xff]
      %v1041 = vld [vmem:[#allocation2 + $0xd0] sm:$0xff]
      %v1042 = vld [vmem:[#allocation2 + $0xd8] sm:$0xff]
      %v1043 = vld [vmem:[#allocation2 + $0xe0] sm:$0xff]
      %v1044 = vld [vmem:[#allocation2 + $0xe8] sm:$0xff]
      %v1045 = vld [vmem:[#allocation2 + $0xf0] sm:$0xff]
      %v1046 = vld [vmem:[#allocation2 + $0xf8] sm:$0xff]
      %v1047 = vmul.f32 %v1031, %v981
      %v1048 = vmul.f32 %v1032, %v981
      %v1049 = vmul.f32 %v1033, %v981
      %v1050 = vmul.f32 %v1034, %v981
      %v1051 = vmul.f32 %v1035, %v981
      %v1052 = vmul.f32 %v1036, %v981
      %v1053 = vmul.f32 %v1037, %v981
      %v1054 = vmul.f32 %v1038, %v981
      %v1055 = vmul.f32 %v1039, %v981
      %v1056 = vmul.f32 %v1040, %v981
      %v1057 = vmul.f32 %v1041, %v981
      %v1058 = vmul.f32 %v1042, %v981
      %v1059 = vmul.f32 %v1043, %v981
      %v1060 = vmul.f32 %v1044, %v981
      %v1061 = vmul.f32 %v1045, %v981
      %v1062 = vmul.f32 %v1046, %v981
      %v1063 = vadd.f32 %v1047, %v998
      %v1064 = vadd.f32 %v1048, %v998
      %v1065 = vadd.f32 %v1049, %v998
      %v1066 = vadd.f32 %v1050, %v998
      %v1067 = vadd.f32 %v1051, %v998
      %v1068 = vadd.f32 %v1052, %v998
      %v1069 = vadd.f32 %v1053, %v998
      %v1070 = vadd.f32 %v1054, %v998
      %v1071 = vadd.f32 %v1055, %v998
      %v1072 = vadd.f32 %v1056, %v998
      %v1073 = vadd.f32 %v1057, %v998
      %v1074 = vadd.f32 %v1058, %v998
      %v1075 = vadd.f32 %v1059, %v998
      %v1076 = vadd.f32 %v1060, %v998
      %v1077 = vadd.f32 %v1061, %v998
      %v1078 = vadd.f32 %v1062, %v998
      %v1079 = vmax.f32 %v1063, 0.0
      %v1080 = vmax.f32 %v1064, 0.0
      %v1081 = vmax.f32 %v1065, 0.0
      %v1082 = vmax.f32 %v1066, 0.0
      %v1083 = vmax.f32 %v1067, 0.0
      %v1084 = vmax.f32 %v1068, 0.0
      %v1085 = vmax.f32 %v1069, 0.0
      %v1086 = vmax.f32 %v1070, 0.0
      %v1087 = vmax.f32 %v1071, 0.0
      %v1088 = vmax.f32 %v1072, 0.0
      %v1089 = vmax.f32 %v1073, 0.0
      %v1090 = vmax.f32 %v1074, 0.0
      %v1091 = vmax.f32 %v1075, 0.0
      %v1092 = vmax.f32 %v1076, 0.0
      %v1093 = vmax.f32 %v1077, 0.0
      %v1094 = vmax.f32 %v1078, 0.0
      %v1095 = vmax.f32 %v1015, %v1079
      %v1096 = vmax.f32 %v1016, %v1080
      %v1097 = vmax.f32 %v1017, %v1081
      %v1098 = vmax.f32 %v1018, %v1082
      %v1099 = vmax.f32 %v1019, %v1083
      %v1100 = vmax.f32 %v1020, %v1084
      %v1101 = vmax.f32 %v1021, %v1085
      %v1102 = vmax.f32 %v1022, %v1086
      %v1103 = vmax.f32 %v1023, %v1087
      %v1104 = vmax.f32 %v1024, %v1088
      %v1105 = vmax.f32 %v1025, %v1089
      %v1106 = vmax.f32 %v1026, %v1090
      %v1107 = vmax.f32 %v1027, %v1091
      %v1108 = vmax.f32 %v1028, %v1092
      %v1109 = vmax.f32 %v1029, %v1093
      %v1110 = vmax.f32 %v1030, %v1094
      %v1111 = vld [vmem:[#allocation2 + $0x100] sm:$0xff]
      %v1112 = vld [vmem:[#allocation2 + $0x108] sm:$0xff]
      %v1113 = vld [vmem:[#allocation2 + $0x110] sm:$0xff]
      %v1114 = vld [vmem:[#allocation2 + $0x118] sm:$0xff]
      %v1115 = vld [vmem:[#allocation2 + $0x120] sm:$0xff]
      %v1116 = vld [vmem:[#allocation2 + $0x128] sm:$0xff]
      %v1117 = vld [vmem:[#allocation2 + $0x130] sm:$0xff]
      %v1118 = vld [vmem:[#allocation2 + $0x138] sm:$0xff]
      %v1119 = vld [vmem:[#allocation2 + $0x140] sm:$0xff]
      %v1120 = vld [vmem:[#allocation2 + $0x148] sm:$0xff]
      %v1121 = vld [vmem:[#allocation2 + $0x150] sm:$0xff]
      %v1122 = vld [vmem:[#allocation2 + $0x158] sm:$0xff]
      %v1123 = vld [vmem:[#allocation2 + $0x160] sm:$0xff]
      %v1124 = vld [vmem:[#allocation2 + $0x168] sm:$0xff]
      %v1125 = vld [vmem:[#allocation2 + $0x170] sm:$0xff]
      %v1126 = vld [vmem:[#allocation2 + $0x178] sm:$0xff]
      %v1127 = vmul.f32 %v1111, %v981
      %v1128 = vmul.f32 %v1112, %v981
      %v1129 = vmul.f32 %v1113, %v981
      %v1130 = vmul.f32 %v1114, %v981
      %v1131 = vmul.f32 %v1115, %v981
      %v1132 = vmul.f32 %v1116, %v981
      %v1133 = vmul.f32 %v1117, %v981
      %v1134 = vmul.f32 %v1118, %v981
      %v1135 = vmul.f32 %v1119, %v981
      %v1136 = vmul.f32 %v1120, %v981
      %v1137 = vmul.f32 %v1121, %v981
      %v1138 = vmul.f32 %v1122, %v981
      %v1139 = vmul.f32 %v1123, %v981
      %v1140 = vmul.f32 %v1124, %v981
      %v1141 = vmul.f32 %v1125, %v981
      %v1142 = vmul.f32 %v1126, %v981
      %v1143 = vadd.f32 %v1127, %v998
      %v1144 = vadd.f32 %v1128, %v998
      %v1145 = vadd.f32 %v1129, %v998
      %v1146 = vadd.f32 %v1130, %v998
      %v1147 = vadd.f32 %v1131, %v998
      %v1148 = vadd.f32 %v1132, %v998
      %v1149 = vadd.f32 %v1133, %v998
      %v1150 = vadd.f32 %v1134, %v998
      %v1151 = vadd.f32 %v1135, %v998
      %v1152 = vadd.f32 %v1136, %v998
      %v1153 = vadd.f32 %v1137, %v998
      %v1154 = vadd.f32 %v1138, %v998
      %v1155 = vadd.f32 %v1139, %v998
      %v1156 = vadd.f32 %v1140, %v998
      %v1157 = vadd.f32 %v1141, %v998
      %v1158 = vadd.f32 %v1142, %v998
      %v1159 = vmax.f32 %v1143, 0.0
      %v1160 = vmax.f32 %v1144, 0.0
      %v1161 = vmax.f32 %v1145, 0.0
      %v1162 = vmax.f32 %v1146, 0.0
      %v1163 = vmax.f32 %v1147, 0.0
      %v1164 = vmax.f32 %v1148, 0.0
      %v1165 = vmax.f32 %v1149, 0.0
      %v1166 = vmax.f32 %v1150, 0.0
      %v1167 = vmax.f32 %v1151, 0.0
      %v1168 = vmax.f32 %v1152, 0.0
      %v1169 = vmax.f32 %v1153, 0.0
      %v1170 = vmax.f32 %v1154, 0.0
      %v1171 = vmax.f32 %v1155, 0.0
      %v1172 = vmax.f32 %v1156, 0.0
      %v1173 = vmax.f32 %v1157, 0.0
      %v1174 = vmax.f32 %v1158, 0.0
      %v1175 = vmax.f32 %v1095, %v1159
      %v1176 = vmax.f32 %v1096, %v1160
      %v1177 = vmax.f32 %v1097, %v1161
      %v1178 = vmax.f32 %v1098, %v1162
      %v1179 = vmax.f32 %v1099, %v1163
      %v1180 = vmax.f32 %v1100, %v1164
      %v1181 = vmax.f32 %v1101, %v1165
      %v1182 = vmax.f32 %v1102, %v1166
      %v1183 = vmax.f32 %v1103, %v1167
      %v1184 = vmax.f32 %v1104, %v1168
      %v1185 = vmax.f32 %v1105, %v1169
      %v1186 = vmax.f32 %v1106, %v1170
      %v1187 = vmax.f32 %v1107, %v1171
      %v1188 = vmax.f32 %v1108, %v1172
      %v1189 = vmax.f32 %v1109, %v1173
      %v1190 = vmax.f32 %v1110, %v1174
      %v1191 = vld [vmem:[#allocation2 + $0x180] sm:$0xff]
      %v1192 = vld [vmem:[#allocation2 + $0x188] sm:$0xff]
      %v1193 = vld [vmem:[#allocation2 + $0x190] sm:$0xff]
      %v1194 = vld [vmem:[#allocation2 + $0x198] sm:$0xff]
      %v1195 = vld [vmem:[#allocation2 + $0x1a0] sm:$0xff]
      %v1196 = vld [vmem:[#allocation2 + $0x1a8] sm:$0xff]
      %v1197 = vld [vmem:[#allocation2 + $0x1b0] sm:$0xff]
      %v1198 = vld [vmem:[#allocation2 + $0x1b8] sm:$0xff]
      %v1199 = vld [vmem:[#allocation2 + $0x1c0] sm:$0xff]
      %v1200 = vld [vmem:[#allocation2 + $0x1c8] sm:$0xff]
      %v1201 = vld [vmem:[#allocation2 + $0x1d0] sm:$0xff]
      %v1202 = vld [vmem:[#allocation2 + $0x1d8] sm:$0xff]
      %v1203 = vld [vmem:[#allocation2 + $0x1e0] sm:$0xff]
      %v1204 = vld [vmem:[#allocation2 + $0x1e8] sm:$0xff]
      %v1205 = vld [vmem:[#allocation2 + $0x1f0] sm:$0xff]
      %v1206 = vld [vmem:[#allocation2 + $0x1f8] sm:$0xff]
      %v1207 = vmul.f32 %v1191, %v981
      %v1208 = vmul.f32 %v1192, %v981
      %v1209 = vmul.f32 %v1193, %v981
      %v1210 = vmul.f32 %v1194, %v981
      %v1211 = vmul.f32 %v1195, %v981
      %v1212 = vmul.f32 %v1196, %v981
      %v1213 = vmul.f32 %v1197, %v981
      %v1214 = vmul.f32 %v1198, %v981
      %v1215 = vmul.f32 %v1199, %v981
      %v1216 = vmul.f32 %v1200, %v981
      %v1217 = vmul.f32 %v1201, %v981
      %v1218 = vmul.f32 %v1202, %v981
      %v1219 = vmul.f32 %v1203, %v981
      %v1220 = vmul.f32 %v1204, %v981
      %v1221 = vmul.f32 %v1205, %v981
      %v1222 = vmul.f32 %v1206, %v981
      %v1223 = vadd.f32 %v1207, %v998
      %v1224 = vadd.f32 %v1208, %v998
      %v1225 = vadd.f32 %v1209, %v998
      %v1226 = vadd.f32 %v1210, %v998
      %v1227 = vadd.f32 %v1211, %v998
      %v1228 = vadd.f32 %v1212, %v998
      %v1229 = vadd.f32 %v1213, %v998
      %v1230 = vadd.f32 %v1214, %v998
      %v1231 = vadd.f32 %v1215, %v998
      %v1232 = vadd.f32 %v1216, %v998
      %v1233 = vadd.f32 %v1217, %v998
      %v1234 = vadd.f32 %v1218, %v998
      %v1235 = vadd.f32 %v1219, %v998
      %v1236 = vadd.f32 %v1220, %v998
      %v1237 = vadd.f32 %v1221, %v998
      %v1238 = vadd.f32 %v1222, %v998
      %v1239 = vmax.f32 %v1223, 0.0
      %v1240 = vmax.f32 %v1224, 0.0
      %v1241 = vmax.f32 %v1225, 0.0
      %v1242 = vmax.f32 %v1226, 0.0
      %v1243 = vmax.f32 %v1227, 0.0
      %v1244 = vmax.f32 %v1228, 0.0
      %v1245 = vmax.f32 %v1229, 0.0
      %v1246 = vmax.f32 %v1230, 0.0
      %v1247 = vmax.f32 %v1231, 0.0
      %v1248 = vmax.f32 %v1232, 0.0
      %v1249 = vmax.f32 %v1233, 0.0
      %v1250 = vmax.f32 %v1234, 0.0
      %v1251 = vmax.f32 %v1235, 0.0
      %v1252 = vmax.f32 %v1236, 0.0
      %v1253 = vmax.f32 %v1237, 0.0
      %v1254 = vmax.f32 %v1238, 0.0
      %v1255 = vmax.f32 %v1175, %v1239
      %v1256 = vmax.f32 %v1176, %v1240
      %v1257 = vmax.f32 %v1177, %v1241
      %v1258 = vmax.f32 %v1178, %v1242
      %v1259 = vmax.f32 %v1179, %v1243
      %v1260 = vmax.f32 %v1180, %v1244
      %v1261 = vmax.f32 %v1181, %v1245
      %v1262 = vmax.f32 %v1182, %v1246
      %v1263 = vmax.f32 %v1183, %v1247
      %v1264 = vmax.f32 %v1184, %v1248
      %v1265 = vmax.f32 %v1185, %v1249
      %v1266 = vmax.f32 %v1186, %v1250
      %v1267 = vmax.f32 %v1187, %v1251
      %v1268 = vmax.f32 %v1188, %v1252
      %v1269 = vmax.f32 %v1189, %v1253
      %v1270 = vmax.f32 %v1190, %v1254
      %1271 = vst.msk [vmem:[#allocation4] sm:$0xff] %vm538, %v1255
      %1272 = vst.msk [vmem:[#allocation4 + $0x8] sm:$0xff] %vm538, %v1256
      %1273 = vst.msk [vmem:[#allocation4 + $0x10] sm:$0xff] %vm538, %v1257
      %1274 = vst.msk [vmem:[#allocation4 + $0x18] sm:$0xff] %vm538, %v1258
      %1275 = vst.msk [vmem:[#allocation4 + $0x20] sm:$0xff] %vm538, %v1259
      %1276 = vst.msk [vmem:[#allocation4 + $0x28] sm:$0xff] %vm538, %v1260
      %1277 = vst.msk [vmem:[#allocation4 + $0x30] sm:$0xff] %vm538, %v1261
      %1278 = vst.msk [vmem:[#allocation4 + $0x38] sm:$0xff] %vm538, %v1262
      %1279 = vst.msk [vmem:[#allocation4 + $0x40] sm:$0xff] %vm538, %v1263
      %1280 = vst.msk [vmem:[#allocation4 + $0x48] sm:$0xff] %vm538, %v1264
      %1281 = vst.msk [vmem:[#allocation4 + $0x50] sm:$0xff] %vm538, %v1265
      %1282 = vst.msk [vmem:[#allocation4 + $0x58] sm:$0xff] %vm538, %v1266
      %1283 = vst.msk [vmem:[#allocation4 + $0x60] sm:$0xff] %vm538, %v1267
      %1284 = vst.msk [vmem:[#allocation4 + $0x68] sm:$0xff] %vm538, %v1268
      %1285 = vst.msk [vmem:[#allocation4 + $0x70] sm:$0xff] %vm538, %v1269
      %1286 = vst.msk [vmem:[#allocation4 + $0x78] sm:$0xff] %vm538, %v1270
    $region21: #{encoder_forward.1} parent=1 // pred_fallthru
      _
    // Predicated region
    $region22: #{encoder_forward.1} parent=1 // pred_check
      _
    $region23: #{encoder_forward.1} parent=1 // pred_check_branch
      %1288 = sbr.rel (0) target = $region25
    $region24: #{encoder_forward.1} parent=1 // pred_region
      %1290 = vsyncadd [#allocation5], 0
      %s1291 = sshll.u32 [#allocation4], 4
      %s1292 = int_to_ptr.vmem [resolvable:$true] %s1291
      %s1293 = sshll.u32 %s3, 4
      %s1294 = int_to_ptr.hbm [resolvable:$true] %s1293
      %1299 = dma.vmem_to_hbm [thread:$0]  %s1292, 2048, %s1294, [#allocation5], 128, 128, 8
    $region25: #{encoder_forward.1} parent=1 // pred_fallthru
      _
    // Predicated region
    $region26: #{encoder_forward.1} parent=1 // pred_check
      _
    $region27: #{encoder_forward.1} parent=1 // pred_check_branch
      %1301 = sbr.rel (0) target = $region29
    $region28: #{encoder_forward.1} parent=1 // pred_region
      %1303 = dma.done [#allocation5], 2048
    $region29: #{encoder_forward.1} parent=1 // pred_fallthru
      _
    %1304 = vsyncpa [#allocation5], 1

</llo_original>
